<compile_context>
chip_gen: v6e
topology: v6e:2x2x1
jax: 0.10.0
libtpu: 0.0.40
codegen_flags: <defaults>
</compile_context>

<pallas_src>
import functools

import jax
import jax.numpy as jnp
from jax.experimental import pallas as pl
from jax.experimental.pallas import tpu as pltpu


def moe_adaptor_kernel(x_ref, wg_ref, w_ref, c_ref, o_ref, *, n_exps):
    """One batch tile.

    x_ref : (tb, D_in)       f32   streamed per tile
    wg_ref: (D_in, E)        bf16  resident (whole array in VMEM)
    w_ref : (E*D_in, D_out)  bf16  resident; row block e*D_in:(e+1)*D_in is W_e
    c_ref : (E, D_out)       bf16  resident; C[e, :] = b_e @ W_e
    o_ref : (tb, D_out)      f32
    """
    x = x_ref[...]                                               # (tb, D_in) f32

    # --- gating: softmax(x @ w_gate); matmul inputs bf16, math in f32 ---
    logits = jnp.dot(x.astype(wg_ref.dtype), wg_ref[...],
                     preferred_element_type=jnp.float32)         # (tb, E)
    m = jnp.max(logits, axis=-1, keepdims=True)
    p = jnp.exp(logits - m)
    gates = p * pl.reciprocal(jnp.sum(p, axis=-1, keepdims=True),
                              approx=True)                        # (tb, E) f32

    # --- fused-K operand: [g_0*x | g_1*x | ... ] -> (tb, E*D_in), one bf16 cast ---
    parts = [gates[:, e:e + 1] * x for e in range(n_exps)]
    scaled = jnp.concatenate(parts, axis=-1).astype(w_ref.dtype)

    # Single big MXU matmul; expert reduction happens in the MXU accumulator.
    acc = jnp.dot(scaled, w_ref[...], preferred_element_type=jnp.float32)

    # Hoisted bias:  sum_e g_e*((x - b_e) @ W_e) = sum_e g_e*(x @ W_e) - gates @ C
    acc = acc - jnp.dot(gates.astype(c_ref.dtype), c_ref[...],
                        preferred_element_type=jnp.float32)

    o_ref[...] = acc.astype(o_ref.dtype)


def _choose_batch_tile(B, tb):
    tb = max(8, min(int(tb), 1024))
    tb -= tb % 8                              # (8, 128) sublane constraint
    tb = min(tb, pl.cdiv(B, 8) * 8)           # never bigger than the (rounded) batch
    if B >= 256:
        # v7x megacore: keep >= 2 batch tiles so both TensorCores get work.
        tb = min(tb, pl.cdiv(pl.cdiv(B, 2), 8) * 8)
    return max(tb, 8)


def moe_adaptor_forward(x, w_gate, expert_w, expert_b, *, tb=512,
                        compute_dtype=jnp.bfloat16):
    """x: (B, D_in); w_gate: (D_in, E); expert_w: (E, D_in, D_out) (transpose of the
    torch nn.Linear weight); expert_b: (E, D_in).  Returns (B, D_out) in x.dtype."""
    B, D_in = x.shape
    E, _, D_out = expert_w.shape

    # One-time weight prep (outside the kernel / outside the hot path).
    w_flat = expert_w.reshape(E * D_in, D_out).astype(compute_dtype)   # (E*D_in, D_out)
    wg = w_gate.astype(compute_dtype)                                  # (D_in, E)
    bias_corr = jnp.einsum('ed,edo->eo', expert_b,
                           expert_w).astype(compute_dtype)             # (E, D_out)

    tb = _choose_batch_tile(B, tb)
    grid = (pl.cdiv(B, tb),)   # ragged last block handled by Pallas, no pad/slice

    kernel = functools.partial(moe_adaptor_kernel, n_exps=E)

    return pl.pallas_call(
        kernel,
        out_shape=jax.ShapeDtypeStruct((B, D_out), x.dtype),
        grid=grid,
        in_specs=[
            pl.BlockSpec((tb, D_in), lambda i: (i, 0)),           # x: streamed per tile
            pl.BlockSpec(memory_space=pltpu.MemorySpace.VMEM),    # w_gate: resident, 1 copy
            pl.BlockSpec(memory_space=pltpu.MemorySpace.VMEM),    # W_flat: resident, 1 copy
            pl.BlockSpec(memory_space=pltpu.MemorySpace.VMEM),    # bias correction
        ],
        out_specs=pl.BlockSpec((tb, D_out), lambda i: (i, 0)),
        compiler_params=pltpu.CompilerParams(
            dimension_semantics=("parallel",),
            vmem_limit_bytes=32 * 1024 * 1024),
    )(x, wg, w_flat, bias_corr)


def moe_adaptor_reference(x, w_gate, expert_w, expert_b):
    gates = jax.nn.softmax(x @ w_gate, axis=-1)                   # (B, E)
    xe = x[:, None, :] - expert_b[None, :, :]                     # (B, E, D_in)
    out = jnp.einsum('bed,edo->beo', xe, expert_w)                # (B, E, D_out)
    return jnp.sum(gates[..., None] * out, axis=1)                # (B, D_out)


if __name__ == "__main__":
    # Small shapes consistent with MoEAdaptorLayer(n_exps=8, layers=[64, 128]).
    # B=40 with tb=16 exercises multiple batch tiles AND the ragged last block.
    B, D_in, D_out, E = 40, 64, 128, 8

    key = jax.random.PRNGKey(0)
    kx, kg, kw, kb = jax.random.split(key, 4)

    x = jax.random.normal(kx, (B, D_in), dtype=jnp.float32)
    # Module __init__ zeros w_gate / bias; use non-trivial values so the softmax
    # mixing and the hoisted-bias correction path are genuinely exercised.
    w_gate = 0.2 * jax.random.normal(kg, (D_in, E), dtype=jnp.float32)
    expert_w = 0.02 * jax.random.normal(kw, (E, D_in, D_out), dtype=jnp.float32)
    expert_b = 0.5 * jax.random.normal(kb, (E, D_in), dtype=jnp.float32)
    # TODO(synk): train-mode noisy gating (randn noise on logits) and dropout are
    # stochastic training-only paths; eval-mode semantics are implemented here.

    ref = moe_adaptor_reference(x, w_gate, expert_w, expert_b)

    # Default bf16 MXU path, small tile -> multi-tile + ragged-last-block coverage.
    out_bf16 = jax.block_until_ready(
        moe_adaptor_forward(x, w_gate, expert_w, expert_b, tb=16))
    assert out_bf16.shape == (B, D_out)
    assert jnp.allclose(out_bf16, ref, atol=2e-2, rtol=2e-2), "bf16 path mismatch"

    # f32 path with default tile selection -> tight check of the semantics.
    out_f32 = jax.block_until_ready(
        moe_adaptor_forward(x, w_gate, expert_w, expert_b,
                            compute_dtype=jnp.float32))
    assert jnp.allclose(out_f32, ref, atol=1e-3, rtol=1e-3), "f32 path mismatch"

    print("KERNEL_OK")
</pallas_src>

<mosaic_0001>
module attributes {stable_mosaic.version = 11 : i64} {
  func.func @moe_adaptor_kernel(%arg0: i32, %arg1: memref<16x64xf32, #tpu.memory_space<vmem>>, %arg2: memref<64x8xbf16, #tpu.memory_space<vmem>>, %arg3: memref<512x128xbf16, #tpu.memory_space<vmem>>, %arg4: memref<8x128xbf16, #tpu.memory_space<vmem>>, %arg5: memref<16x128xf32, #tpu.memory_space<vmem>>) attributes {dimension_semantics = [#tpu.dimension_semantics<parallel>], iteration_bounds = array<i64: 3>, scalar_prefetch = 0 : i64, scratch_operands = 0 : i64, tpu.core_type = #tpu.core_type<tc>, window_params = [{transform_indices = @transform_0, window_bounds = array<i64: 16, 64>}, {pipeline_mode = #tpu.pipeline_mode<synchronous>, transform_indices = @transform_1, window_bounds = array<i64: 64, 8>}, {pipeline_mode = #tpu.pipeline_mode<synchronous>, transform_indices = @transform_2, window_bounds = array<i64: 512, 128>}, {pipeline_mode = #tpu.pipeline_mode<synchronous>, transform_indices = @transform_3, window_bounds = array<i64: 8, 128>}, {transform_indices = @transform_4, window_bounds = array<i64: 16, 128>}]} {
    %c0 = arith.constant 0 : index
    %c0_0 = arith.constant 0 : index
    %0 = vector.load %arg1[%c0, %c0_0] : memref<16x64xf32, #tpu.memory_space<vmem>>, vector<16x64xf32>
    %1 = arith.truncf %0 : vector<16x64xf32> to vector<16x64xbf16>
    %c0_1 = arith.constant 0 : index
    %c0_2 = arith.constant 0 : index
    %2 = vector.load %arg2[%c0_1, %c0_2] : memref<64x8xbf16, #tpu.memory_space<vmem>>, vector<64x8xbf16>
    %cst = arith.constant dense<0.000000e+00> : vector<16x8xf32>
    %3 = tpu.matmul %1, %2, %cst {dimension_numbers = #tpu.dot_dimension_numbers<[1], [0], [0], [1], [0, 0, 1, 1], [], []>} : vector<16x64xbf16>, vector<64x8xbf16>, vector<16x8xf32> -> vector<16x8xf32>
    %cst_3 = arith.constant dense<0xFF800000> : vector<16xf32>
    %4 = vector.multi_reduction <maximumf>, %3, %cst_3 [1] : vector<16x8xf32> to vector<16xf32>
    %5 = vector.shape_cast %4 : vector<16xf32> to vector<16x1xf32>
    %6 = vector.broadcast %5 : vector<16x1xf32> to vector<16x8xf32>
    %7 = arith.subf %3, %6 : vector<16x8xf32>
    %8 = math.exp %7 : vector<16x8xf32>
    %cst_4 = arith.constant dense<0.000000e+00> : vector<16xf32>
    %9 = vector.multi_reduction <add>, %8, %cst_4 [1] : vector<16x8xf32> to vector<16xf32>
    %10 = vector.shape_cast %9 : vector<16xf32> to vector<16x1xf32>
    %11 = tpu.reciprocal %10 {approx = true} : vector<16x1xf32> -> vector<16x1xf32>
    %12 = vector.broadcast %11 : vector<16x1xf32> to vector<16x8xf32>
    %13 = arith.mulf %8, %12 : vector<16x8xf32>
    %14 = vector.extract_strided_slice %13 {offsets = [0, 0], sizes = [16, 1], strides = [1, 1]} : vector<16x8xf32> to vector<16x1xf32>
    %15 = vector.broadcast %14 : vector<16x1xf32> to vector<16x64xf32>
    %16 = arith.mulf %15, %0 : vector<16x64xf32>
    %17 = vector.extract_strided_slice %13 {offsets = [0, 1], sizes = [16, 1], strides = [1, 1]} : vector<16x8xf32> to vector<16x1xf32>
    %18 = vector.broadcast %17 : vector<16x1xf32> to vector<16x64xf32>
    %19 = arith.mulf %18, %0 : vector<16x64xf32>
    %20 = vector.extract_strided_slice %13 {offsets = [0, 2], sizes = [16, 1], strides = [1, 1]} : vector<16x8xf32> to vector<16x1xf32>
    %21 = vector.broadcast %20 : vector<16x1xf32> to vector<16x64xf32>
    %22 = arith.mulf %21, %0 : vector<16x64xf32>
    %23 = vector.extract_strided_slice %13 {offsets = [0, 3], sizes = [16, 1], strides = [1, 1]} : vector<16x8xf32> to vector<16x1xf32>
    %24 = vector.broadcast %23 : vector<16x1xf32> to vector<16x64xf32>
    %25 = arith.mulf %24, %0 : vector<16x64xf32>
    %26 = vector.extract_strided_slice %13 {offsets = [0, 4], sizes = [16, 1], strides = [1, 1]} : vector<16x8xf32> to vector<16x1xf32>
    %27 = vector.broadcast %26 : vector<16x1xf32> to vector<16x64xf32>
    %28 = arith.mulf %27, %0 : vector<16x64xf32>
    %29 = vector.extract_strided_slice %13 {offsets = [0, 5], sizes = [16, 1], strides = [1, 1]} : vector<16x8xf32> to vector<16x1xf32>
    %30 = vector.broadcast %29 : vector<16x1xf32> to vector<16x64xf32>
    %31 = arith.mulf %30, %0 : vector<16x64xf32>
    %32 = vector.extract_strided_slice %13 {offsets = [0, 6], sizes = [16, 1], strides = [1, 1]} : vector<16x8xf32> to vector<16x1xf32>
    %33 = vector.broadcast %32 : vector<16x1xf32> to vector<16x64xf32>
    %34 = arith.mulf %33, %0 : vector<16x64xf32>
    %35 = vector.extract_strided_slice %13 {offsets = [0, 7], sizes = [16, 1], strides = [1, 1]} : vector<16x8xf32> to vector<16x1xf32>
    %36 = vector.broadcast %35 : vector<16x1xf32> to vector<16x64xf32>
    %37 = arith.mulf %36, %0 : vector<16x64xf32>
    %38 = tpu.concatenate %16, %19, %22, %25, %28, %31, %34, %37 in 1 : vector<16x64xf32>, vector<16x64xf32>, vector<16x64xf32>, vector<16x64xf32>, vector<16x64xf32>, vector<16x64xf32>, vector<16x64xf32>, vector<16x64xf32> -> vector<16x512xf32>
    %39 = arith.truncf %38 : vector<16x512xf32> to vector<16x512xbf16>
    %c0_5 = arith.constant 0 : index
    %c0_6 = arith.constant 0 : index
    %40 = vector.load %arg3[%c0_5, %c0_6] : memref<512x128xbf16, #tpu.memory_space<vmem>>, vector<512x128xbf16>
    %cst_7 = arith.constant dense<0.000000e+00> : vector<16x128xf32>
    %41 = tpu.matmul %39, %40, %cst_7 {dimension_numbers = #tpu.dot_dimension_numbers<[1], [0], [0], [1], [0, 0, 1, 1], [], []>} : vector<16x512xbf16>, vector<512x128xbf16>, vector<16x128xf32> -> vector<16x128xf32>
    %42 = arith.truncf %13 : vector<16x8xf32> to vector<16x8xbf16>
    %c0_8 = arith.constant 0 : index
    %c0_9 = arith.constant 0 : index
    %43 = vector.load %arg4[%c0_8, %c0_9] : memref<8x128xbf16, #tpu.memory_space<vmem>>, vector<8x128xbf16>
    %cst_10 = arith.constant dense<0.000000e+00> : vector<16x128xf32>
    %44 = tpu.matmul %42, %43, %cst_10 {dimension_numbers = #tpu.dot_dimension_numbers<[1], [0], [0], [1], [0, 0, 1, 1], [], []>} : vector<16x8xbf16>, vector<8x128xbf16>, vector<16x128xf32> -> vector<16x128xf32>
    %45 = arith.subf %41, %44 : vector<16x128xf32>
    %c0_11 = arith.constant 0 : index
    %c0_12 = arith.constant 0 : index
    %46 = vector.load %arg5[%c0_11, %c0_12] : memref<16x128xf32, #tpu.memory_space<vmem>>, vector<16x128xf32>
    tpu.vector_store %arg5[%c0_11, %c0_12], %45 {strides = array<i32>} : memref<16x128xf32, #tpu.memory_space<vmem>>, vector<16x128xf32>,
    return
  }
  func.func @transform_0(%arg0: i32) -> (i32, i32) {
    %c0_i32 = arith.constant 0 : i32
    %c0_i32_0 = arith.constant 0 : i32
    return %arg0, %c0_i32 : i32, i32
  }
  func.func @transform_1(%arg0: i32) -> (i32, i32) {
    %c0_i32 = arith.constant 0 : i32
    %c0_i32_0 = arith.constant 0 : i32
    %c0_i32_1 = arith.constant 0 : i32
    return %c0_i32, %c0_i32_0 : i32, i32
  }
  func.func @transform_2(%arg0: i32) -> (i32, i32) {
    %c0_i32 = arith.constant 0 : i32
    %c0_i32_0 = arith.constant 0 : i32
    %c0_i32_1 = arith.constant 0 : i32
    return %c0_i32, %c0_i32_0 : i32, i32
  }
  func.func @transform_3(%arg0: i32) -> (i32, i32) {
    %c0_i32 = arith.constant 0 : i32
    %c0_i32_0 = arith.constant 0 : i32
    %c0_i32_1 = arith.constant 0 : i32
    return %c0_i32, %c0_i32_0 : i32, i32
  }
  func.func @transform_4(%arg0: i32) -> (i32, i32) {
    %c0_i32 = arith.constant 0 : i32
    %c0_i32_0 = arith.constant 0 : i32
    return %arg0, %c0_i32 : i32, i32
  }
}

</mosaic_0001>

<llo_original>
// kernel: tpu_custom_call.1
$region0: #{tpu_custom_call.1}
  #allocation0 [shape = 'u32[]', space=smem, size = 0x4, offset = 0x4, fixed_abs, tag = 'smem constant byte address 0x4 - core index']
  #allocation1 [shape = 'u32[144,128]{1,0:T(1,128)}', space=vmem, size = 0x12000, scoped, tag = 'internal scratch']
  %s0 = inlined_call_operand.hbm [shape: f32[40,64], index: 0, kind: input, shape index: {}]
  %s1 = inlined_call_operand.vmem [shape: bf16[64,8], index: 1, kind: input, shape index: {}]
  %s2 = inlined_call_operand.hbm [shape: bf16[512,128], index: 2, kind: input, shape index: {}]
  %s3 = inlined_call_operand.vmem [shape: bf16[8,128], index: 3, kind: input, shape index: {}]
  %s4 = inlined_call_operand.hbm [shape: f32[40,128], index: 4, kind: output, shape index: {}]
  %s5 = sld [smem:[#allocation0]]
  $region57: #{tpu_custom_call.1} parent=0
    _
  %s7 = ssub.s32 1, %s5
  %s8 = scalar_select 0, %s7, %s5
  $region1: #{tpu_custom_call.1} parent=0
    #allocation2 [shape = 'u8[16384]{0}', space=vmem, size = 0x4000, scoped, tag = 'input window, operand 0']
    #allocation3 [shape = 's32[2]{0}', space=sflag, size = 0x8, scoped, tag = 'scoped memory for tpu_custom_call.1']
    #allocation4 [shape = 's32[2]{0}', space=sflag, size = 0x8, scoped, tag = 'scoped memory for tpu_custom_call.1']
    #allocation5 [shape = 'u8[131072]{0}', space=vmem, size = 0x20000, scoped, tag = 'input window, operand 2, single buffered']
    #allocation6 [shape = 's32[1]{0}', space=sflag, size = 0x4, scoped, tag = 'scoped memory for tpu_custom_call.1']
    #allocation7 [shape = 'u8[16384]{0}', space=vmem, size = 0x4000, scoped, tag = 'output window, operand 0']
    %9 = vsyncpa [#allocation3], 0
    %s10 = scalar_lea.sflag [#allocation3], 1
    %11 = vsyncpa %s10, 0
    %12 = vsyncpa [#allocation6], 0
    %13 = vsyncpa [#allocation4], 0
    %s14 = scalar_lea.sflag [#allocation4], 1
    %15 = vsyncpa %s14, 0
    loop: start=0, step=1, limit=5
    $region2: #{tpu_custom_call.1} parent=1 // loop_pre_header
      _
    $region3: #{tpu_custom_call.1} parent=1 // loop_header
      %s17 = sphi 0, %s21
      %p18 = scmp.ge.s32.totalorder %s17, 5
      %s27 = sphi 0, %s29
      %s30 = sphi 0, %s27
      %s31 = sphi 0, %s30
      %s47 = sphi 0, %s31
      %s51 = sphi 0, %s51
      %s53 = sphi 0, %s51
      %s54 = sphi 0, %s53
      %s68 = sphi 0, %s54
      %s72 = sphi 0, %s72
      %s74 = sphi 0, %s72
      %s75 = sphi 0, %s74
      %s89 = sphi 0, %s75
      %s93 = sphi 0, %s93
      %s95 = sphi 0, %s93
      %s96 = sphi 0, %s95
      %s110 = sphi 0, %s96
      %s116 = sphi 0, %s118
      %s119 = sphi 0, %s116
      %s120 = sphi 0, %s119
      %s136 = sphi 0, %s120
    $region4: #{tpu_custom_call.1} parent=1 // loop_header_branch
      %20 = sbr.rel (%p18) target = $region8
    $region5: #{tpu_custom_call.1} parent=1 // loop_body
      %s22 = ssub.s32 %s17, 1
      %s23 = ssub.s32 %s17, 2
      %s24 = sadd.s32 %s17, 1
      %s25 = ssub.s32 %s17, %s24
      %p26 = scmp.eq.s32.totalorder %s25, 0
      %s28 = sadd.s32 %s27, 1
      %s29 = scalar_select %p26, %s27, %s28
      %p32 = pneg %p26
      %p33 = scmp.eq.s32.totalorder %s17, 2
      %p34 = por %p32, %p33
      %p35 = scmp.ne.s32.totalorder %s27, %s30
      %p36 = scmp.eq.s32.totalorder %s17, 0
      %p37 = por %p35, %p36
      %p38 = scmp.ne.s32.totalorder %s27, %s30
      %p39 = scmp.eq.s32.totalorder %s22, 2
      %p40 = por %p38, %p39
      %p41 = scmp.ne.s32.totalorder %s30, %s31
      %p42 = scmp.eq.s32.totalorder %s22, 0
      %p43 = por %p41, %p42
      %p44 = scmp.ne.s32.totalorder %s30, %s31
      %p45 = scmp.eq.s32.totalorder %s23, 2
      %p46 = por %p44, %p45
      %p48 = scmp.ne.s32.totalorder %s31, %s47
      %p49 = scmp.eq.s32.totalorder %s23, 0
      %p50 = por %p48, %p49
      %s52 = sadd.s32 %s51, 1
      %p55 = scmp.eq.s32.totalorder %s17, 2
      %p56 = scmp.ne.s32.totalorder %s51, %s53
      %p57 = scmp.eq.s32.totalorder %s17, 0
      %p58 = por %p56, %p57
      %p59 = scmp.ne.s32.totalorder %s51, %s53
      %p60 = scmp.eq.s32.totalorder %s22, 2
      %p61 = por %p59, %p60
      %p62 = scmp.ne.s32.totalorder %s53, %s54
      %p63 = scmp.eq.s32.totalorder %s22, 0
      %p64 = por %p62, %p63
      %p65 = scmp.ne.s32.totalorder %s53, %s54
      %p66 = scmp.eq.s32.totalorder %s23, 2
      %p67 = por %p65, %p66
      %p69 = scmp.ne.s32.totalorder %s54, %s68
      %p70 = scmp.eq.s32.totalorder %s23, 0
      %p71 = por %p69, %p70
      %s73 = sadd.s32 %s72, 1
      %p76 = scmp.eq.s32.totalorder %s17, 2
      %p77 = scmp.ne.s32.totalorder %s72, %s74
      %p78 = scmp.eq.s32.totalorder %s17, 0
      %p79 = por %p77, %p78
      %p80 = scmp.ne.s32.totalorder %s72, %s74
      %p81 = scmp.eq.s32.totalorder %s22, 2
      %p82 = por %p80, %p81
      %p83 = scmp.ne.s32.totalorder %s74, %s75
      %p84 = scmp.eq.s32.totalorder %s22, 0
      %p85 = por %p83, %p84
      %p86 = scmp.ne.s32.totalorder %s74, %s75
      %p87 = scmp.eq.s32.totalorder %s23, 2
      %p88 = por %p86, %p87
      %p90 = scmp.ne.s32.totalorder %s75, %s89
      %p91 = scmp.eq.s32.totalorder %s23, 0
      %p92 = por %p90, %p91
      %s94 = sadd.s32 %s93, 1
      %p97 = scmp.eq.s32.totalorder %s17, 2
      %p98 = scmp.ne.s32.totalorder %s93, %s95
      %p99 = scmp.eq.s32.totalorder %s17, 0
      %p100 = por %p98, %p99
      %p101 = scmp.ne.s32.totalorder %s93, %s95
      %p102 = scmp.eq.s32.totalorder %s22, 2
      %p103 = por %p101, %p102
      %p104 = scmp.ne.s32.totalorder %s95, %s96
      %p105 = scmp.eq.s32.totalorder %s22, 0
      %p106 = por %p104, %p105
      %p107 = scmp.ne.s32.totalorder %s95, %s96
      %p108 = scmp.eq.s32.totalorder %s23, 2
      %p109 = por %p107, %p108
      %p111 = scmp.ne.s32.totalorder %s96, %s110
      %p112 = scmp.eq.s32.totalorder %s23, 0
      %p113 = por %p111, %p112
      %s114 = ssub.s32 %s17, %s24
      %p115 = scmp.eq.s32.totalorder %s114, 0
      %s117 = sadd.s32 %s116, 1
      %s118 = scalar_select %p115, %s116, %s117
      %p121 = pneg %p115
      %p122 = scmp.eq.s32.totalorder %s17, 2
      %p123 = por %p121, %p122
      %p124 = scmp.ne.s32.totalorder %s116, %s119
      %p125 = scmp.eq.s32.totalorder %s17, 0
      %p126 = por %p124, %p125
      %p127 = scmp.ne.s32.totalorder %s116, %s119
      %p128 = scmp.eq.s32.totalorder %s22, 2
      %p129 = por %p127, %p128
      %p130 = scmp.ne.s32.totalorder %s119, %s120
      %p131 = scmp.eq.s32.totalorder %s22, 0
      %p132 = por %p130, %p131
      %p133 = scmp.ne.s32.totalorder %s119, %s120
      %p134 = scmp.eq.s32.totalorder %s23, 2
      %p135 = por %p133, %p134
      %p137 = scmp.ne.s32.totalorder %s120, %s136
      %p138 = scmp.eq.s32.totalorder %s23, 0
      %p139 = por %p137, %p138
      %p140 = scmp.le.s32.totalorder 1, %s17
      %p141 = scmp.lt.s32.totalorder %s17, 4
      %p142 = pnand %p140, %p141
      %p143 = pneg %p142
      // Predicated region
      $region9: #{tpu_custom_call.1} parent=5 // pred_check
        _
      $region10: #{tpu_custom_call.1} parent=5 // pred_check_branch
        %145 = sbr.rel (%p142) target = $region12
      $region11: #{tpu_custom_call.1} parent=5 // pred_region
        %s146 = ssub.s32 %s17, 1
        // Predicated region
        $region13: #{tpu_custom_call.1} parent=11 // pred_check
          %p147 = pneg %p64
        $region14: #{tpu_custom_call.1} parent=11 // pred_check_branch
          %149 = sbr.rel (%p147) target = $region16
        $region15: #{tpu_custom_call.1} parent=11 // pred_region
          _
        $region16: #{tpu_custom_call.1} parent=11 // pred_fallthru
          _
        // Predicated region
        $region17: #{tpu_custom_call.1} parent=11 // pred_check
          %p150 = pneg %p85
        $region18: #{tpu_custom_call.1} parent=11 // pred_check_branch
          %152 = sbr.rel (%p150) target = $region20
        $region19: #{tpu_custom_call.1} parent=11 // pred_region
          %s154 = ssub.s32 4096, 4096
          %155 = vsyncadd [#allocation6], %s154
          %s156 = sshll.u32 [#allocation5], 4
          %s157 = int_to_ptr.vmem [resolvable:$true] %s156
          %162 = dma.hbm_to_vmem [thread:$0]  %s2, 4096, %s157, [#allocation6], 64, 64, 4
        $region20: #{tpu_custom_call.1} parent=11 // pred_fallthru
          _
        // Predicated region
        $region21: #{tpu_custom_call.1} parent=11 // pred_check
          %p163 = pneg %p106
        $region22: #{tpu_custom_call.1} parent=11 // pred_check_branch
          %165 = sbr.rel (%p163) target = $region24
        $region23: #{tpu_custom_call.1} parent=11 // pred_region
          _
        $region24: #{tpu_custom_call.1} parent=11 // pred_fallthru
          _
      $region12: #{tpu_custom_call.1} parent=5 // pred_fallthru
        _
      %p166 = scmp.lt.s32.totalorder %s17, 3
      // Predicated region
      $region25: #{tpu_custom_call.1} parent=5 // pred_check
        %p167 = pneg %p166
      $region26: #{tpu_custom_call.1} parent=5 // pred_check_branch
        %169 = sbr.rel (%p167) target = $region28
      $region27: #{tpu_custom_call.1} parent=5 // pred_region
        // Predicated region
        $region29: #{tpu_custom_call.1} parent=27 // pred_check
          %p170 = pneg %p37
        $region30: #{tpu_custom_call.1} parent=27 // pred_check_branch
          %172 = sbr.rel (%p170) target = $region32
        $region31: #{tpu_custom_call.1} parent=27 // pred_region
          %s173 = sand.u32 %s27, 1
          %s174 = scalar_lea.sflag [#allocation3], %s173
          %s175 = sand.u32 %s27, 1
          %s176 = smul.addr %s175, 16
          %s177 = scalar_lea.vmem [#allocation2], %s176
          %s178 = smul.u32 2, %s17
          %s179 = ssub.s32 5, %s178
          %p180 = scmp.lt.s32.totalorder %s179, 2
          %s181 = scalar_select %p180, %s179, 2
          %s182 = smul.u32 128, %s181
          %s184 = ssub.s32 256, %s182
          %185 = vsyncadd %s174, %s184
          %p186 = scmp.ne.s32.totalorder 0, %s182
          %s187 = smul.addr %s178, 128
          %s188 = scalar_lea.hbm %s0, %s187
          %s189 = smul.u32 8, %s181
          %s190 = sshll.u32 %s177, 4
          %s191 = int_to_ptr.vmem [resolvable:$true] %s190
          %s192 = sshll.u32 %s189, 4
          %196 = dma.hbm_to_vmem [thread:$0]  (%p186), %s188, %s192, %s191, %s174, 128, 128, 8
        $region32: #{tpu_custom_call.1} parent=27 // pred_fallthru
          _
      $region28: #{tpu_custom_call.1} parent=5 // pred_fallthru
        _
      %p197 = scmp.le.s32.totalorder 1, %s17
      %p198 = scmp.lt.s32.totalorder %s17, 4
      %p199 = pnand %p197, %p198
      %p200 = pneg %p199
      // Predicated region
      $region33: #{tpu_custom_call.1} parent=5 // pred_check
        _
      $region34: #{tpu_custom_call.1} parent=5 // pred_check_branch
        %202 = sbr.rel (%p199) target = $region36
      $region35: #{tpu_custom_call.1} parent=5 // pred_region
        %s203 = ssub.s32 %s17, 1
        %s204 = sand.u32 %s30, 1
        %s205 = scalar_lea.sflag [#allocation3], %s204
        %s206 = sand.u32 %s30, 1
        %s207 = smul.addr %s206, 16
        %s208 = scalar_lea.vmem [#allocation2], %s207
        // Predicated region
        $region37: #{tpu_custom_call.1} parent=35 // pred_check
          %p209 = pneg %p43
        $region38: #{tpu_custom_call.1} parent=35 // pred_check_branch
          %211 = sbr.rel (%p209) target = $region40
        $region39: #{tpu_custom_call.1} parent=35 // pred_region
          %212 = dma.done %s205, 256
        $region40: #{tpu_custom_call.1} parent=35 // pred_fallthru
          _
        // Predicated region
        $region41: #{tpu_custom_call.1} parent=35 // pred_check
          %p213 = pneg %p85
        $region42: #{tpu_custom_call.1} parent=35 // pred_check_branch
          %215 = sbr.rel (%p213) target = $region44
        $region43: #{tpu_custom_call.1} parent=35 // pred_region
          %216 = dma.done [#allocation6], 4096
        $region44: #{tpu_custom_call.1} parent=35 // pred_fallthru
          _
        %s217 = sand.u32 %s30, 1
        %s218 = scalar_lea.sflag [#allocation3], %s217
        %s219 = sand.u32 %s30, 1
        %s220 = smul.addr %s219, 16
        %s221 = scalar_lea.vmem [#allocation2], %s220
        %p222 = pneg %p43
        %p223 = pneg %p40
        %p224 = pneg %p64
        %p225 = pneg %p61
        %p226 = pneg %p85
        %p227 = pneg %p82
        %p228 = pneg %p106
        %p229 = pneg %p103
        %p230 = pneg %p132
        %p231 = pneg %p129
        %s232 = sand.u32 %s119, 1
        %s233 = scalar_lea.sflag [#allocation4], %s232
        %s234 = sand.u32 %s119, 1
        %s235 = smul.addr %s234, 16
        %s236 = scalar_lea.vmem [#allocation7], %s235
        %s237 = smul.u32 2, %s22
        %s238 = ssub.s32 5, %s237
        %p239 = scmp.lt.s32.totalorder %s238, 2
        %s240 = scalar_select %p239, %s238, 2
        %s241 = smul.u32 128, %s240
        %s242 = smul.u32 2, %s22
        %s243 = ssub.s32 5, %s242
        %p244 = scmp.lt.s32.totalorder %s243, 2
        %s245 = scalar_select %p244, %s243, 2
        %s246 = smul.u32 128, %s245
        %v248 = vld [vmem:[%s208] sm:$0xff]
        %v249 = vld [vmem:[%s208 + $0x8] sm:$0xff]
        %v250 = vpack.c.bf16 %v249, %v248
        %v251 = vld [vmem:[%s1] sm:$0xf]
        %v252 = vld [vmem:[%s1 + $0x4] sm:$0xf]
        %v253 = vld [vmem:[%s1 + $0x8] sm:$0xf]
        %v254 = vld [vmem:[%s1 + $0xc] sm:$0xf]
        %v255 = vld [vmem:[%s1 + $0x10] sm:$0xf]
        %v256 = vld [vmem:[%s1 + $0x14] sm:$0xf]
        %v257 = vld [vmem:[%s1 + $0x18] sm:$0xf]
        %v258 = vld [vmem:[%s1 + $0x1c] sm:$0xf]
        %v267 = vunpack.c.l.b16 %v251
        %v268 = vunpack.c.l.b16 %v252
        %v269 = vunpack.c.l.b16 %v253
        %v270 = vunpack.c.l.b16 %v254
        %v271 = vunpack.c.l.b16 %v255
        %v272 = vunpack.c.l.b16 %v256
        %v273 = vunpack.c.l.b16 %v257
        %v274 = vunpack.c.l.b16 %v258
        %v275 = vpack.c.b16 %v268, %v267
        %v276 = vpack.c.b16 %v270, %v269
        %v277 = vpack.c.b16 %v272, %v271
        %v278 = vpack.c.b16 %v274, %v273
        %vm283 = vcmask 523264
        %v285 = vsel %vm283, %v250, 0
        %287 = vmatprep.subr.bf16.mxu0 0
        %288 = vmatpush1.bf16.msra.mxu0 0
        %289 = vmatprep.subr.bf16.mxu0 0
        %290 = vmatpush1.bf16.msra.mxu0 0
        %291 = vmatprep.subr.bf16.mxu0 0
        %292 = vmatpush1.bf16.msra.mxu0 0
        %293 = vmatprep.subr.bf16.mxu0 0
        %294 = vmatpush1.bf16.msra.mxu0 0
        %295 = vmatprep.subr.bf16.mxu0 0
        %296 = vmatpush1.bf16.msra.mxu0 %v278
        %297 = vmatprep.subr.bf16.mxu0 0
        %298 = vmatpush1.bf16.msra.mxu0 %v277
        %299 = vmatprep.subr.bf16.mxu0 0
        %300 = vmatpush1.bf16.msra.mxu0 %v276
        %301 = vmatprep.subr.bf16.mxu0 0
        %302 = vmatpush1.bf16.msra.mxu0 %v275
        %303 = vmatprep.subr.bf16.mxu0 0
        %304 = vmatpush2.bf16.msra.mxu0 0
        %305 = vmatprep.subr.bf16.mxu0 0
        %306 = vmatpush2.bf16.msra.mxu0 0
        %307 = vmatprep.subr.bf16.mxu0 0
        %308 = vmatpush2.bf16.msra.mxu0 0
        %309 = vmatprep.subr.bf16.mxu0 0
        %310 = vmatpush2.bf16.msra.mxu0 0
        %311 = vmatprep.subr.bf16.mxu0 0
        %312 = vmatpush2.bf16.msra.mxu0 0
        %313 = vmatprep.subr.bf16.mxu0 0
        %314 = vmatpush2.bf16.msra.mxu0 0
        %315 = vmatprep.subr.bf16.mxu0 0
        %316 = vmatpush2.bf16.msra.mxu0 0
        %317 = vmatprep.subr.bf16.mxu0 0
        %318 = vmatpush2.bf16.msra.mxu0 0
        %319 = vmatprep.mubr.bf16.mxu0 0
        %320 = vmatmul.mubr.bf16.gmra.mxu0 %v285
        %v321 = vpop.f32.mrf.mxu0
        %v322 = vadd.f32 0.0, %v321
        %v323 = vpop.f32.mrf.mxu0
        %v324 = vpop.f32.mrf.mxu0
        %v325 = vadd.f32 0.0, %v324
        %v326 = vpop.f32.mrf.mxu0
        %327 = vdwg.mxu0
        %vm328 = vcmask 64512
        %v329 = vsel %vm328, %v322, -inf
        %330 = vmax.xlane.f32.xlu0 %v329
        %v331 = vpop.xlane.xlu0 %330
        %v332 = vsel %vm328, %v325, -inf
        %333 = vmax.xlane.f32.xlu0 %v332
        %v334 = vpop.xlane.xlu0 %333
        %v335 = vsub.f32 %v322, %v331
        %v336 = vsub.f32 %v325, %v334
        %v337 = vmul.f32 %v335, 1.442695
        %v338 = vpow.pop %v337
        %v339 = vmul.f32 %v336, 1.442695
        %v340 = vpow.pop %v339
        %v341 = vsel %vm328, %v338, 0.0
        %342 = vadd.xlane.f32.xlu0 %v341
        %v343 = vpop.xlane.xlu0 %342
        %v344 = vsel %vm328, %v340, 0.0
        %345 = vadd.xlane.f32.xlu0 %v344
        %v346 = vpop.xlane.xlu0 %345
        %v347 = vrcp.pop %v343
        %v348 = vrcp.pop %v346
        %v349 = vmul.f32 %v338, %v347
        %v350 = vmul.f32 %v340, %v348
        %352 = vset.pattern.permute.xlu0 0
        %353 = vperm.xlu0 %352, %v349
        %v354 = vpop.permute.xlu0 %353
        %357 = vset.pattern.permute.xlu0 0
        %358 = vperm.xlu0 %357, %v350
        %v359 = vpop.permute.xlu0 %358
        %v361 = vmul.f32 %v354, %v248
        %v362 = vmul.f32 %v359, %v249
        %363 = vset.pattern.permute.xlu0 1
        %364 = vperm.xlu0 %363, %v349
        %v365 = vpop.permute.xlu0 %364
        %367 = vset.pattern.permute.xlu0 1
        %368 = vperm.xlu0 %367, %v350
        %v369 = vpop.permute.xlu0 %368
        %v371 = vmul.f32 %v365, %v248
        %v372 = vmul.f32 %v369, %v249
        %373 = vset.pattern.permute.xlu0 2
        %374 = vperm.xlu0 %373, %v349
        %v375 = vpop.permute.xlu0 %374
        %377 = vset.pattern.permute.xlu0 2
        %378 = vperm.xlu0 %377, %v350
        %v379 = vpop.permute.xlu0 %378
        %v381 = vmul.f32 %v375, %v248
        %v382 = vmul.f32 %v379, %v249
        %383 = vset.pattern.permute.xlu0 3
        %384 = vperm.xlu0 %383, %v349
        %v385 = vpop.permute.xlu0 %384
        %387 = vset.pattern.permute.xlu0 3
        %388 = vperm.xlu0 %387, %v350
        %v389 = vpop.permute.xlu0 %388
        %v391 = vmul.f32 %v385, %v248
        %v392 = vmul.f32 %v389, %v249
        %393 = vset.pattern.permute.xlu0 4
        %394 = vperm.xlu0 %393, %v349
        %v395 = vpop.permute.xlu0 %394
        %397 = vset.pattern.permute.xlu0 4
        %398 = vperm.xlu0 %397, %v350
        %v399 = vpop.permute.xlu0 %398
        %v401 = vmul.f32 %v395, %v248
        %v402 = vmul.f32 %v399, %v249
        %403 = vset.pattern.permute.xlu0 5
        %404 = vperm.xlu0 %403, %v349
        %v405 = vpop.permute.xlu0 %404
        %407 = vset.pattern.permute.xlu0 5
        %408 = vperm.xlu0 %407, %v350
        %v409 = vpop.permute.xlu0 %408
        %v411 = vmul.f32 %v405, %v248
        %v412 = vmul.f32 %v409, %v249
        %413 = vset.pattern.permute.xlu0 6
        %414 = vperm.xlu0 %413, %v349
        %v415 = vpop.permute.xlu0 %414
        %417 = vset.pattern.permute.xlu0 6
        %418 = vperm.xlu0 %417, %v350
        %v419 = vpop.permute.xlu0 %418
        %v421 = vmul.f32 %v415, %v248
        %v422 = vmul.f32 %v419, %v249
        %423 = vset.pattern.permute.xlu0 7
        %424 = vperm.xlu0 %423, %v349
        %v425 = vpop.permute.xlu0 %424
        %427 = vset.pattern.permute.xlu0 7
        %428 = vperm.xlu0 %427, %v350
        %v429 = vpop.permute.xlu0 %428
        %v431 = vmul.f32 %v425, %v248
        %v432 = vmul.f32 %v429, %v249
        %435 = vrot.lane.b32.xlu0 %v371, 64
        %v436 = vpop.permute.xlu0 %435
        %437 = vrot.lane.b32.xlu0 %v372, 64
        %v438 = vpop.permute.xlu0 %437
        %443 = vrot.lane.b32.xlu0 %v391, 64
        %v444 = vpop.permute.xlu0 %443
        %445 = vrot.lane.b32.xlu0 %v392, 64
        %v446 = vpop.permute.xlu0 %445
        %451 = vrot.lane.b32.xlu0 %v411, 64
        %v452 = vpop.permute.xlu0 %451
        %453 = vrot.lane.b32.xlu0 %v412, 64
        %v454 = vpop.permute.xlu0 %453
        %459 = vrot.lane.b32.xlu0 %v431, 64
        %v460 = vpop.permute.xlu0 %459
        %461 = vrot.lane.b32.xlu0 %v432, 64
        %v462 = vpop.permute.xlu0 %461
        %v465 = vsel %vm283, %v361, %v436
        %v466 = vsel %vm283, %v362, %v438
        %v467 = vsel %vm283, %v381, %v444
        %v468 = vsel %vm283, %v382, %v446
        %v469 = vsel %vm283, %v401, %v452
        %v470 = vsel %vm283, %v402, %v454
        %v471 = vsel %vm283, %v421, %v460
        %v472 = vsel %vm283, %v422, %v462
        %v473 = vpack.c.bf16 %v466, %v465
        %v474 = vpack.c.bf16 %v468, %v467
        %v475 = vpack.c.bf16 %v470, %v469
        %v476 = vpack.c.bf16 %v472, %v471
        %v477 = vld [vmem:[#allocation5] sm:$0xf]
        %v478 = vld [vmem:[#allocation5 + $0x4] sm:$0xf]
        %v479 = vld [vmem:[#allocation5 + $0x8] sm:$0xf]
        %v480 = vld [vmem:[#allocation5 + $0xc] sm:$0xf]
        %v481 = vld [vmem:[#allocation5 + $0x10] sm:$0xf]
        %v482 = vld [vmem:[#allocation5 + $0x14] sm:$0xf]
        %v483 = vld [vmem:[#allocation5 + $0x18] sm:$0xf]
        %v484 = vld [vmem:[#allocation5 + $0x1c] sm:$0xf]
        %v485 = vld [vmem:[#allocation5 + $0x20] sm:$0xf]
        %v486 = vld [vmem:[#allocation5 + $0x24] sm:$0xf]
        %v487 = vld [vmem:[#allocation5 + $0x28] sm:$0xf]
        %v488 = vld [vmem:[#allocation5 + $0x2c] sm:$0xf]
        %v489 = vld [vmem:[#allocation5 + $0x30] sm:$0xf]
        %v490 = vld [vmem:[#allocation5 + $0x34] sm:$0xf]
        %v491 = vld [vmem:[#allocation5 + $0x38] sm:$0xf]
        %v492 = vld [vmem:[#allocation5 + $0x3c] sm:$0xf]
        %v493 = vld [vmem:[#allocation5 + $0x40] sm:$0xf]
        %v494 = vld [vmem:[#allocation5 + $0x44] sm:$0xf]
        %v495 = vld [vmem:[#allocation5 + $0x48] sm:$0xf]
        %v496 = vld [vmem:[#allocation5 + $0x4c] sm:$0xf]
        %v497 = vld [vmem:[#allocation5 + $0x50] sm:$0xf]
        %v498 = vld [vmem:[#allocation5 + $0x54] sm:$0xf]
        %v499 = vld [vmem:[#allocation5 + $0x58] sm:$0xf]
        %v500 = vld [vmem:[#allocation5 + $0x5c] sm:$0xf]
        %v501 = vld [vmem:[#allocation5 + $0x60] sm:$0xf]
        %v502 = vld [vmem:[#allocation5 + $0x64] sm:$0xf]
        %v503 = vld [vmem:[#allocation5 + $0x68] sm:$0xf]
        %v504 = vld [vmem:[#allocation5 + $0x6c] sm:$0xf]
        %v505 = vld [vmem:[#allocation5 + $0x70] sm:$0xf]
        %v506 = vld [vmem:[#allocation5 + $0x74] sm:$0xf]
        %v507 = vld [vmem:[#allocation5 + $0x78] sm:$0xf]
        %v508 = vld [vmem:[#allocation5 + $0x7c] sm:$0xf]
        %v509 = vld [vmem:[#allocation5 + $0x80] sm:$0xf]
        %v510 = vld [vmem:[#allocation5 + $0x84] sm:$0xf]
        %v511 = vld [vmem:[#allocation5 + $0x88] sm:$0xf]
        %v512 = vld [vmem:[#allocation5 + $0x8c] sm:$0xf]
        %v513 = vld [vmem:[#allocation5 + $0x90] sm:$0xf]
        %v514 = vld [vmem:[#allocation5 + $0x94] sm:$0xf]
        %v515 = vld [vmem:[#allocation5 + $0x98] sm:$0xf]
        %v516 = vld [vmem:[#allocation5 + $0x9c] sm:$0xf]
        %v517 = vld [vmem:[#allocation5 + $0xa0] sm:$0xf]
        %v518 = vld [vmem:[#allocation5 + $0xa4] sm:$0xf]
        %v519 = vld [vmem:[#allocation5 + $0xa8] sm:$0xf]
        %v520 = vld [vmem:[#allocation5 + $0xac] sm:$0xf]
        %v521 = vld [vmem:[#allocation5 + $0xb0] sm:$0xf]
        %v522 = vld [vmem:[#allocation5 + $0xb4] sm:$0xf]
        %v523 = vld [vmem:[#allocation5 + $0xb8] sm:$0xf]
        %v524 = vld [vmem:[#allocation5 + $0xbc] sm:$0xf]
        %v525 = vld [vmem:[#allocation5 + $0xc0] sm:$0xf]
        %v526 = vld [vmem:[#allocation5 + $0xc4] sm:$0xf]
        %v527 = vld [vmem:[#allocation5 + $0xc8] sm:$0xf]
        %v528 = vld [vmem:[#allocation5 + $0xcc] sm:$0xf]
        %v529 = vld [vmem:[#allocation5 + $0xd0] sm:$0xf]
        %v530 = vld [vmem:[#allocation5 + $0xd4] sm:$0xf]
        %v531 = vld [vmem:[#allocation5 + $0xd8] sm:$0xf]
        %v532 = vld [vmem:[#allocation5 + $0xdc] sm:$0xf]
        %v533 = vld [vmem:[#allocation5 + $0xe0] sm:$0xf]
        %v534 = vld [vmem:[#allocation5 + $0xe4] sm:$0xf]
        %v535 = vld [vmem:[#allocation5 + $0xe8] sm:$0xf]
        %v536 = vld [vmem:[#allocation5 + $0xec] sm:$0xf]
        %v537 = vld [vmem:[#allocation5 + $0xf0] sm:$0xf]
        %v538 = vld [vmem:[#allocation5 + $0xf4] sm:$0xf]
        %v539 = vld [vmem:[#allocation5 + $0xf8] sm:$0xf]
        %v540 = vld [vmem:[#allocation5 + $0xfc] sm:$0xf]
        %v605 = vunpack.c.l.b16 %v477
        %v606 = vunpack.c.l.b16 %v478
        %v607 = vunpack.c.l.b16 %v479
        %v608 = vunpack.c.l.b16 %v480
        %v609 = vunpack.c.l.b16 %v481
        %v610 = vunpack.c.l.b16 %v482
        %v611 = vunpack.c.l.b16 %v483
        %v612 = vunpack.c.l.b16 %v484
        %v613 = vunpack.c.l.b16 %v485
        %v614 = vunpack.c.l.b16 %v486
        %v615 = vunpack.c.l.b16 %v487
        %v616 = vunpack.c.l.b16 %v488
        %v617 = vunpack.c.l.b16 %v489
        %v618 = vunpack.c.l.b16 %v490
        %v619 = vunpack.c.l.b16 %v491
        %v620 = vunpack.c.l.b16 %v492
        %v621 = vunpack.c.l.b16 %v493
        %v622 = vunpack.c.l.b16 %v494
        %v623 = vunpack.c.l.b16 %v495
        %v624 = vunpack.c.l.b16 %v496
        %v625 = vunpack.c.l.b16 %v497
        %v626 = vunpack.c.l.b16 %v498
        %v627 = vunpack.c.l.b16 %v499
        %v628 = vunpack.c.l.b16 %v500
        %v629 = vunpack.c.l.b16 %v501
        %v630 = vunpack.c.l.b16 %v502
        %v631 = vunpack.c.l.b16 %v503
        %v632 = vunpack.c.l.b16 %v504
        %v633 = vunpack.c.l.b16 %v505
        %v634 = vunpack.c.l.b16 %v506
        %v635 = vunpack.c.l.b16 %v507
        %v636 = vunpack.c.l.b16 %v508
        %v637 = vunpack.c.l.b16 %v509
        %v638 = vunpack.c.l.b16 %v510
        %v639 = vunpack.c.l.b16 %v511
        %v640 = vunpack.c.l.b16 %v512
        %v641 = vunpack.c.l.b16 %v513
        %v642 = vunpack.c.l.b16 %v514
        %v643 = vunpack.c.l.b16 %v515
        %v644 = vunpack.c.l.b16 %v516
        %v645 = vunpack.c.l.b16 %v517
        %v646 = vunpack.c.l.b16 %v518
        %v647 = vunpack.c.l.b16 %v519
        %v648 = vunpack.c.l.b16 %v520
        %v649 = vunpack.c.l.b16 %v521
        %v650 = vunpack.c.l.b16 %v522
        %v651 = vunpack.c.l.b16 %v523
        %v652 = vunpack.c.l.b16 %v524
        %v653 = vunpack.c.l.b16 %v525
        %v654 = vunpack.c.l.b16 %v526
        %v655 = vunpack.c.l.b16 %v527
        %v656 = vunpack.c.l.b16 %v528
        %v657 = vunpack.c.l.b16 %v529
        %v658 = vunpack.c.l.b16 %v530
        %v659 = vunpack.c.l.b16 %v531
        %v660 = vunpack.c.l.b16 %v532
        %v661 = vunpack.c.l.b16 %v533
        %v662 = vunpack.c.l.b16 %v534
        %v663 = vunpack.c.l.b16 %v535
        %v664 = vunpack.c.l.b16 %v536
        %v665 = vunpack.c.l.b16 %v537
        %v666 = vunpack.c.l.b16 %v538
        %v667 = vunpack.c.l.b16 %v539
        %v668 = vunpack.c.l.b16 %v540
        %v669 = vpack.c.b16 %v606, %v605
        %v670 = vpack.c.b16 %v608, %v607
        %v671 = vpack.c.b16 %v610, %v609
        %v672 = vpack.c.b16 %v612, %v611
        %v673 = vpack.c.b16 %v614, %v613
        %v674 = vpack.c.b16 %v616, %v615
        %v675 = vpack.c.b16 %v618, %v617
        %v676 = vpack.c.b16 %v620, %v619
        %v677 = vpack.c.b16 %v622, %v621
        %v678 = vpack.c.b16 %v624, %v623
        %v679 = vpack.c.b16 %v626, %v625
        %v680 = vpack.c.b16 %v628, %v627
        %v681 = vpack.c.b16 %v630, %v629
        %v682 = vpack.c.b16 %v632, %v631
        %v683 = vpack.c.b16 %v634, %v633
        %v684 = vpack.c.b16 %v636, %v635
        %v685 = vpack.c.b16 %v638, %v637
        %v686 = vpack.c.b16 %v640, %v639
        %v687 = vpack.c.b16 %v642, %v641
        %v688 = vpack.c.b16 %v644, %v643
        %v689 = vpack.c.b16 %v646, %v645
        %v690 = vpack.c.b16 %v648, %v647
        %v691 = vpack.c.b16 %v650, %v649
        %v692 = vpack.c.b16 %v652, %v651
        %v693 = vpack.c.b16 %v654, %v653
        %v694 = vpack.c.b16 %v656, %v655
        %v695 = vpack.c.b16 %v658, %v657
        %v696 = vpack.c.b16 %v660, %v659
        %v697 = vpack.c.b16 %v662, %v661
        %v698 = vpack.c.b16 %v664, %v663
        %v699 = vpack.c.b16 %v666, %v665
        %v700 = vpack.c.b16 %v668, %v667
        %733 = vmatprep.subr.bf16.mxu0 0
        %734 = vmatpush1.bf16.msra.mxu0 %v676
        %735 = vmatprep.subr.bf16.mxu0 0
        %736 = vmatpush1.bf16.msra.mxu0 %v675
        %737 = vmatprep.subr.bf16.mxu0 0
        %738 = vmatpush1.bf16.msra.mxu0 %v674
        %739 = vmatprep.subr.bf16.mxu0 0
        %740 = vmatpush1.bf16.msra.mxu0 %v673
        %741 = vmatprep.subr.bf16.mxu0 0
        %742 = vmatpush1.bf16.msra.mxu0 %v672
        %743 = vmatprep.subr.bf16.mxu0 0
        %744 = vmatpush1.bf16.msra.mxu0 %v671
        %745 = vmatprep.subr.bf16.mxu0 0
        %746 = vmatpush1.bf16.msra.mxu0 %v670
        %747 = vmatprep.subr.bf16.mxu0 0
        %748 = vmatpush1.bf16.msra.mxu0 %v669
        %749 = vmatprep.subr.bf16.mxu0 0
        %750 = vmatpush2.bf16.msra.mxu0 %v684
        %751 = vmatprep.subr.bf16.mxu0 0
        %752 = vmatpush2.bf16.msra.mxu0 %v683
        %753 = vmatprep.subr.bf16.mxu0 0
        %754 = vmatpush2.bf16.msra.mxu0 %v682
        %755 = vmatprep.subr.bf16.mxu0 0
        %756 = vmatpush2.bf16.msra.mxu0 %v681
        %757 = vmatprep.subr.bf16.mxu0 0
        %758 = vmatpush2.bf16.msra.mxu0 %v680
        %759 = vmatprep.subr.bf16.mxu0 0
        %760 = vmatpush2.bf16.msra.mxu0 %v679
        %761 = vmatprep.subr.bf16.mxu0 0
        %762 = vmatpush2.bf16.msra.mxu0 %v678
        %763 = vmatprep.subr.bf16.mxu0 0
        %764 = vmatpush2.bf16.msra.mxu0 %v677
        %765 = vmatprep.mubr.bf16.mxu0 %v474
        %766 = vmatmul.mubr.bf16.gmra.mxu0 %v473
        %v767 = vpop.f32.mrf.mxu0
        %v768 = vadd.f32 0.0, %v767
        %v769 = vpop.f32.mrf.mxu0
        %v770 = vpop.f32.mrf.mxu0
        %v771 = vadd.f32 0.0, %v770
        %v772 = vpop.f32.mrf.mxu0
        %773 = vdwg.mxu0
        %774 = vmatprep.subr.bf16.mxu0 0
        %775 = vmatpush1.bf16.msra.mxu0 %v692
        %776 = vmatprep.subr.bf16.mxu0 0
        %777 = vmatpush1.bf16.msra.mxu0 %v691
        %778 = vmatprep.subr.bf16.mxu0 0
        %779 = vmatpush1.bf16.msra.mxu0 %v690
        %780 = vmatprep.subr.bf16.mxu0 0
        %781 = vmatpush1.bf16.msra.mxu0 %v689
        %782 = vmatprep.subr.bf16.mxu0 0
        %783 = vmatpush1.bf16.msra.mxu0 %v688
        %784 = vmatprep.subr.bf16.mxu0 0
        %785 = vmatpush1.bf16.msra.mxu0 %v687
        %786 = vmatprep.subr.bf16.mxu0 0
        %787 = vmatpush1.bf16.msra.mxu0 %v686
        %788 = vmatprep.subr.bf16.mxu0 0
        %789 = vmatpush1.bf16.msra.mxu0 %v685
        %790 = vmatprep.subr.bf16.mxu0 0
        %791 = vmatpush2.bf16.msra.mxu0 %v700
        %792 = vmatprep.subr.bf16.mxu0 0
        %793 = vmatpush2.bf16.msra.mxu0 %v699
        %794 = vmatprep.subr.bf16.mxu0 0
        %795 = vmatpush2.bf16.msra.mxu0 %v698
        %796 = vmatprep.subr.bf16.mxu0 0
        %797 = vmatpush2.bf16.msra.mxu0 %v697
        %798 = vmatprep.subr.bf16.mxu0 0
        %799 = vmatpush2.bf16.msra.mxu0 %v696
        %800 = vmatprep.subr.bf16.mxu0 0
        %801 = vmatpush2.bf16.msra.mxu0 %v695
        %802 = vmatprep.subr.bf16.mxu0 0
        %803 = vmatpush2.bf16.msra.mxu0 %v694
        %804 = vmatprep.subr.bf16.mxu0 0
        %805 = vmatpush2.bf16.msra.mxu0 %v693
        %806 = vmatprep.mubr.bf16.mxu0 %v476
        %807 = vmatmul.mubr.bf16.gmra.mxu0 %v475
        %v808 = vpop.f32.mrf.mxu0
        %v809 = vadd.f32 %v768, %v808
        %v810 = vpop.f32.mrf.mxu0
        %v811 = vpop.f32.mrf.mxu0
        %v812 = vadd.f32 %v771, %v811
        %v813 = vpop.f32.mrf.mxu0
        %814 = vdwg.mxu0
        %v815 = vpack.c.bf16 %v350, %v349
        %v816 = vld [vmem:[%s3] sm:$0xf]
        %v818 = vsel %vm328, %v815, 0
        %vm820 = vcmask 1043456
        %v822 = vsel %vm820, %v816, 0
        %824 = vmatprep.subr.bf16.mxu0 0
        %825 = vmatpush1.bf16.msra.mxu0 0
        %826 = vmatprep.subr.bf16.mxu0 0
        %827 = vmatpush1.bf16.msra.mxu0 0
        %828 = vmatprep.subr.bf16.mxu0 0
        %829 = vmatpush1.bf16.msra.mxu0 0
        %830 = vmatprep.subr.bf16.mxu0 0
        %831 = vmatpush1.bf16.msra.mxu0 0
        %832 = vmatprep.subr.bf16.mxu0 0
        %833 = vmatpush1.bf16.msra.mxu0 0
        %834 = vmatprep.subr.bf16.mxu0 0
        %835 = vmatpush1.bf16.msra.mxu0 0
        %836 = vmatprep.subr.bf16.mxu0 0
        %837 = vmatpush1.bf16.msra.mxu0 0
        %838 = vmatprep.subr.bf16.mxu0 0
        %839 = vmatpush1.bf16.msra.mxu0 %v822
        %840 = vmatprep.subr.bf16.mxu0 0
        %841 = vmatpush2.bf16.msra.mxu0 0
        %842 = vmatprep.subr.bf16.mxu0 0
        %843 = vmatpush2.bf16.msra.mxu0 0
        %844 = vmatprep.subr.bf16.mxu0 0
        %845 = vmatpush2.bf16.msra.mxu0 0
        %846 = vmatprep.subr.bf16.mxu0 0
        %847 = vmatpush2.bf16.msra.mxu0 0
        %848 = vmatprep.subr.bf16.mxu0 0
        %849 = vmatpush2.bf16.msra.mxu0 0
        %850 = vmatprep.subr.bf16.mxu0 0
        %851 = vmatpush2.bf16.msra.mxu0 0
        %852 = vmatprep.subr.bf16.mxu0 0
        %853 = vmatpush2.bf16.msra.mxu0 0
        %854 = vmatprep.subr.bf16.mxu0 0
        %855 = vmatpush2.bf16.msra.mxu0 0
        %856 = vmatprep.mubr.bf16.mxu0 0
        %857 = vmatmul.mubr.bf16.gmra.mxu0 %v818
        %v858 = vpop.f32.mrf.mxu0
        %v859 = vadd.f32 0.0, %v858
        %v860 = vpop.f32.mrf.mxu0
        %v861 = vpop.f32.mrf.mxu0
        %v862 = vadd.f32 0.0, %v861
        %v863 = vpop.f32.mrf.mxu0
        %864 = vdwg.mxu0
        %v865 = vsub.f32 %v809, %v859
        %v866 = vsub.f32 %v812, %v862
        %867 = vst [vmem:[%s236] sm:$0xff] %v865
        %868 = vst [vmem:[%s236 + $0x8] sm:$0xff] %v866
        %s869 = sand.u32 %s119, 1
        %s870 = scalar_lea.sflag [#allocation4], %s869
        %s871 = sand.u32 %s119, 1
        %s872 = smul.addr %s871, 16
        %s873 = scalar_lea.vmem [#allocation7], %s872
        // Predicated region
        $region45: #{tpu_custom_call.1} parent=35 // pred_check
          %p874 = pneg %p129
        $region46: #{tpu_custom_call.1} parent=35 // pred_check_branch
          %876 = sbr.rel (%p874) target = $region48
        $region47: #{tpu_custom_call.1} parent=35 // pred_region
          %s877 = smul.u32 2, %s22
          %s878 = ssub.s32 5, %s877
          %p879 = scmp.lt.s32.totalorder %s878, 2
          %s880 = scalar_select %p879, %s878, 2
          %s881 = smul.u32 128, %s880
          %s883 = ssub.s32 256, %s881
          %884 = vsyncadd %s870, %s883
          %p885 = scmp.ne.s32.totalorder 0, %s881
          %s886 = smul.addr %s877, 128
          %s887 = scalar_lea.hbm %s4, %s886
          %s888 = smul.u32 8, %s880
          %s889 = sshll.u32 %s873, 4
          %s890 = int_to_ptr.vmem [resolvable:$true] %s889
          %s891 = sshll.u32 %s888, 4
          %895 = dma.vmem_to_hbm [thread:$0]  (%p885), %s890, %s891, %s887, %s870, 128, 128, 8
        $region48: #{tpu_custom_call.1} parent=35 // pred_fallthru
          _
      $region36: #{tpu_custom_call.1} parent=5 // pred_fallthru
        _
      %p896 = scmp.le.s32.totalorder 2, %s17
      // Predicated region
      $region49: #{tpu_custom_call.1} parent=5 // pred_check
        %p897 = pneg %p896
      $region50: #{tpu_custom_call.1} parent=5 // pred_check_branch
        %899 = sbr.rel (%p897) target = $region52
      $region51: #{tpu_custom_call.1} parent=5 // pred_region
        %s900 = ssub.s32 %s17, 2
        // Predicated region
        $region53: #{tpu_custom_call.1} parent=51 // pred_check
          %p901 = pneg %p135
        $region54: #{tpu_custom_call.1} parent=51 // pred_check_branch
          %903 = sbr.rel (%p901) target = $region56
        $region55: #{tpu_custom_call.1} parent=51 // pred_region
          %s904 = sand.u32 %s120, 1
          %s905 = scalar_lea.sflag [#allocation4], %s904
          %s906 = sand.u32 %s120, 1
          %s907 = smul.addr %s906, 16
          %s908 = scalar_lea.vmem [#allocation7], %s907
          %909 = dma.done %s905, 256
        $region56: #{tpu_custom_call.1} parent=51 // pred_fallthru
          _
      $region52: #{tpu_custom_call.1} parent=5 // pred_fallthru
        _
    $region6: #{tpu_custom_call.1} parent=1 // loop_footer
      %s21 = sadd.s32 1, %s17
    $region7: #{tpu_custom_call.1} parent=1 // loop_footer_branch
      %16 = sbr.rel target = $region3
    $region8: #{tpu_custom_call.1} parent=1 // loop_exit
      _
    %910 = vsyncpa [#allocation3], 1
    %s911 = scalar_lea.sflag [#allocation3], 1
    %912 = vsyncpa %s911, 1
    %913 = vsyncpa [#allocation6], 1
    %914 = vsyncpa [#allocation4], 1
    %s915 = scalar_lea.sflag [#allocation4], 1
    %916 = vsyncpa %s915, 1

</llo_original>
